<compile_context>
chip_gen: v7x
topology: tpu7x:2x2x1
jax: 0.10.0
libtpu: 0.0.40
codegen_flags: <defaults>
</compile_context>

<pallas_src>
import functools

import jax
import jax.numpy as jnp
import numpy as np
from jax import lax
from jax.experimental import pallas as pl
from jax.experimental.pallas import tpu as pltpu

EPS = 1e-7
BASELINE = 0.54  # KITTI stereo baseline used by _disp2depth_kitti_K


# ----------------------------------------------------------------------------
# static glue: 1-D bilinear (align_corners=True) resize expressed as a matrix
# ----------------------------------------------------------------------------
def _resize_matrix_align_corners(dst, src):
    """R[dst, src] such that out = R @ in reproduces 1-D bilinear align_corners=True."""
    if src == 1 or dst == 1:
        R = jnp.zeros((dst, src), jnp.float32)
        return R.at[:, 0].set(1.0)
    coords = jnp.arange(dst, dtype=jnp.float32) * (float(src - 1) / float(dst - 1))
    lo = jnp.clip(jnp.floor(coords), 0, src - 2).astype(jnp.int32)
    hi = lo + 1
    w_hi = coords - lo.astype(jnp.float32)
    w_lo = 1.0 - w_hi
    cols = jnp.arange(src, dtype=jnp.int32)[None, :]
    R = (w_lo[:, None] * (cols == lo[:, None]).astype(jnp.float32)
         + w_hi[:, None] * (cols == hi[:, None]).astype(jnp.float32))
    return R.astype(jnp.float32)


def _prepare_camera(x_shape, k1, input_size):
    """Per-batch 3x3 algebra (glue): scaled K, inv(K)[:3,:3], fx."""
    _, _, H, W = x_shape
    sy = (H / input_size[:, 0]).astype(jnp.float32)
    sx = (W / input_size[:, 1]).astype(jnp.float32)
    k1_s = k1.astype(jnp.float32)
    k1_s = k1_s.at[:, 0, :].multiply(sx[:, None])   # intrinsic_scale: row 0 *= sx
    k1_s = k1_s.at[:, 1, :].multiply(sy[:, None])   #                  row 1 *= sy
    inv_k = jnp.linalg.inv(k1_s)                    # torch.inverse(k1_s)  (glue, plain JAX)
    invK3 = inv_k[:, :3, :3]
    K3 = k1_s[:, :3, :3]
    fx = k1_s[:, 0, 0]
    return K3, invK3, fx


# ----------------------------------------------------------------------------
# in-kernel helpers
# ----------------------------------------------------------------------------
def _fast_recip(x):
    # EUP approximate reciprocal (free slot) + one Newton-Raphson step on the
    # VPU -> ~f32 accuracy; keeps the projection denominator accurate enough
    # that sampling coordinates stay well below 1e-3 px error.
    r = pl.reciprocal(x, approx=True)
    return r * (2.0 - x * r)


# ----------------------------------------------------------------------------
# Pallas kernel: one (batch, destination-tile) pair per grid step
# ----------------------------------------------------------------------------
def _warp_sf_kernel(scal_ref, x_ref, sf_ref, disp_ref, coord_ref, out_ref,
                    *, H, W, C, T):
    b = pl.program_id(0)

    # ---- 1. upsampled disparity -> depth: depth = fx*0.54 / (disp + (1-(disp>0)))
    disp = disp_ref[0]                                   # [1, T]
    fx = scal_ref[b, 18]
    pos = (disp > 0.0).astype(jnp.float32)
    depth = (fx * BASELINE) * _fast_recip(disp + (1.0 - pos))

    # ---- 2. destination pixel coords (precomputed, lane-dense; no int div/mod)
    xg = coord_ref[0:1, :]                               # [1, T]
    yg = coord_ref[1:2, :]                               # [1, T]

    # ---- 3. backproject (mode='sf'): cam = inv(K)[:3,:3] @ [x; y; 1] * depth
    i00 = scal_ref[b, 0]; i01 = scal_ref[b, 1]; i02 = scal_ref[b, 2]
    i10 = scal_ref[b, 3]; i11 = scal_ref[b, 4]; i12 = scal_ref[b, 5]
    i20 = scal_ref[b, 6]; i21 = scal_ref[b, 7]; i22 = scal_ref[b, 8]
    cam0 = (i00 * xg + i01 * yg + i02) * depth
    cam1 = (i10 * xg + i11 * yg + i12) * depth
    cam2 = (i20 * xg + i21 * yg + i22) * depth

    # ---- 4. add sceneflow, project with K (mode='sf'), normalize to [-1, 1]
    p0 = cam0 + sf_ref[0, 0:1, :]
    p1 = cam1 + sf_ref[0, 1:2, :]
    p2 = cam2 + sf_ref[0, 2:3, :]
    k00 = scal_ref[b, 9];  k01 = scal_ref[b, 10]; k02 = scal_ref[b, 11]
    k10 = scal_ref[b, 12]; k11 = scal_ref[b, 13]; k12 = scal_ref[b, 14]
    k20 = scal_ref[b, 15]; k21 = scal_ref[b, 16]; k22 = scal_ref[b, 17]
    pr0 = k00 * p0 + k01 * p1 + k02 * p2
    pr1 = k10 * p0 + k11 * p1 + k12 * p2
    pr2 = k20 * p0 + k21 * p1 + k22 * p2

    inv_den = _fast_recip(pr2 + EPS)                     # shared for gx and gy
    gx = ((pr0 * inv_den) * (1.0 / float(W - 1)) - 0.5) * 2.0
    gy = ((pr1 * inv_den) * (1.0 / float(H - 1)) - 0.5) * 2.0

    # grid_sample source coords (bilinear, zeros padding, align_corners=False)
    ix = ((gx + 1.0) * W - 1.0) * 0.5
    iy = ((gy + 1.0) * H - 1.0) * 0.5
    # clamp far-out-of-bounds samples (zero result either way) so the tent math
    # stays tame; does not change results.
    ix = jnp.clip(ix, -2.0, float(W) + 1.0)
    iy = jnp.clip(iy, -2.0, float(H) + 1.0)

    # ---- 5. separable truncated-tent bilinear gather
    # zeros-padding bilinear == sum over the integer grid of the product of two
    # truncated tents, which separates into:
    #   per channel:  A = x[c] @ tx           ([H,W] @ [W,T] on the MXU, bf16)
    #                 out[c] = sum_h A * ty   (VPU mul + sublane reduce)
    h_idx = lax.broadcasted_iota(jnp.int32, (H, T), 0).astype(jnp.float32)
    w_idx = lax.broadcasted_iota(jnp.int32, (W, T), 0).astype(jnp.float32)
    ty = jnp.maximum(1.0 - jnp.abs(h_idx - iy), 0.0)     # [H, T]
    tx = jnp.maximum(1.0 - jnp.abs(w_idx - ix), 0.0)     # [W, T]
    tx_b = tx.astype(jnp.bfloat16)

    for c in range(C):                                   # C is small and static
        a = jnp.dot(x_ref[0, c], tx_b,
                    preferred_element_type=jnp.float32)  # [H, T] f32
        out_ref[0, c:c + 1, :] = jnp.sum(a * ty, axis=0, keepdims=True)


# ----------------------------------------------------------------------------
# tile / VMEM sizing (per-generation budget)
# ----------------------------------------------------------------------------
def _vmem_capacity_bytes():
    try:
        info = pltpu.get_tpu_info()
        cap = getattr(info, "vmem_capacity_bytes", None)
        if cap:
            return int(cap)
    except Exception:
        pass
    return 64 << 20  # conservative default (v7x per-core VMEM)


def _round_up(v, m):
    return ((v + m - 1) // m) * m


def _tile_vmem_bytes(t, H, W, C):
    """Per-tile VMEM estimate, including in-kernel temporaries."""
    streamed = 2 * ((3 + 1 + 2) + C) * 4 * t        # double-buffered sf/disp/coords + out
    weights = (H + W) * 4 * t + W * 2 * t           # ty, tx (f32) + bf16 copy of tx
    iotas = (H + W) * 4 * t                         # broadcasted iotas
    interm = 2 * H * 4 * t                          # per-channel dot results (f32)
    vectors = 32 * 4 * t                            # ~32 [1, T] f32 temporaries
    return streamed + weights + iotas + interm + vectors


def _resident_vmem_bytes(H, W, C):
    return C * H * W * 2                            # bf16 source image, single-buffered


def _pick_tile(HW, H, W, C, vmem_cap):
    """Largest multiple-of-128 destination tile that fits the VMEM budget."""
    budget = max(int(vmem_cap * 0.6) - _resident_vmem_bytes(H, W, C), 4 << 20)
    max_tile = min(_round_up(HW, 128), 8 * 1024)    # cap for pipelining granularity
    tile = 128
    t = 128
    while t <= max_tile:
        if _tile_vmem_bytes(t, H, W, C) <= budget:
            tile = t
        t += 128
    return tile


# ----------------------------------------------------------------------------
# wrapper
# ----------------------------------------------------------------------------
def warp_sceneflow_pallas(x, sceneflow, disp, k1, input_size, *, tile=None):
    B, C, H, W = x.shape
    _, _, hd, wd = disp.shape
    HW = H * W

    # glue: per-batch 3x3 camera algebra packed into 19 SMEM-prefetched scalars
    K3, invK3, fx = _prepare_camera(x.shape, k1, input_size)
    scal = jnp.concatenate(
        [invK3.reshape(B, 9), K3.reshape(B, 9), fx[:, None]], axis=1
    ).astype(jnp.float32)                                           # [B, 19]

    # glue: separable bilinear (align_corners=True) disp upsample, then * disp_w.
    # NOTE: the module reads disp_w from disp BEFORE interpolate2d_as, i.e. the
    # low-resolution width wd -- matched here (and in the reference).
    Ry = _resize_matrix_align_corners(H, hd)                        # [H, hd]
    Rx = _resize_matrix_align_corners(W, wd)                        # [W, wd]
    disp_up = jnp.einsum('ya,xb,nab->nyx', Ry, Rx,
                         disp[:, 0].astype(jnp.float32)) * float(wd)
    disp_up = disp_up.reshape(B, 1, HW)                             # lane-dense

    sf_flat = sceneflow.reshape(B, 3, HW).astype(jnp.float32)

    # lane-dense destination pixel coordinates (avoid in-kernel int div/mod)
    xs = jnp.arange(W, dtype=jnp.float32)
    ys = jnp.arange(H, dtype=jnp.float32)
    xgrid, ygrid = jnp.meshgrid(xs, ys, indexing='xy')              # [H, W]
    coords = jnp.stack([xgrid.reshape(-1), ygrid.reshape(-1)], 0)   # [2, HW]

    # generation-aware tile selection + padding (never fall back to tile=HW)
    vmem_cap = _vmem_capacity_bytes()
    if tile is None:
        tile = _pick_tile(HW, H, W, C, vmem_cap)
    assert tile % 128 == 0
    HW_pad = _round_up(HW, tile)
    pad = HW_pad - HW
    if pad:
        disp_up = jnp.pad(disp_up, ((0, 0), (0, 0), (0, pad)))
        sf_flat = jnp.pad(sf_flat, ((0, 0), (0, 0), (0, pad)))
        coords = jnp.pad(coords, ((0, 0), (0, pad)))

    # bf16 source: native MXU dtype, halves resident VMEM and HBM traffic
    x_bf16 = x.astype(jnp.bfloat16)

    kernel = functools.partial(_warp_sf_kernel, H=H, W=W, C=C, T=tile)

    vmem_est = _tile_vmem_bytes(tile, H, W, C) + 2 * _resident_vmem_bytes(H, W, C)
    vmem_limit = int(min(vmem_cap - (2 << 20), max(vmem_est + (8 << 20), 32 << 20)))

    out = pl.pallas_call(
        kernel,
        out_shape=jax.ShapeDtypeStruct((B, C, HW_pad), jnp.float32),
        grid_spec=pltpu.PrefetchScalarGridSpec(
            num_scalar_prefetch=1,
            grid=(B, HW_pad // tile),
            in_specs=[
                # resident source image: constant across the tile axis -> single buffer
                pl.BlockSpec((1, C, H, W), lambda b, t, s: (b, 0, 0, 0),
                             pipeline_mode=pl.Buffered(1)),
                pl.BlockSpec((1, 3, tile), lambda b, t, s: (b, 0, t)),   # sceneflow tile
                pl.BlockSpec((1, 1, tile), lambda b, t, s: (b, 0, t)),   # upsampled disp tile
                pl.BlockSpec((2, tile), lambda b, t, s: (0, t)),         # dest pixel coords
            ],
            out_specs=pl.BlockSpec((1, C, tile), lambda b, t, s: (b, 0, t)),
        ),
        compiler_params=pltpu.CompilerParams(
            dimension_semantics=("parallel", "parallel"),
            vmem_limit_bytes=vmem_limit,
        ),
    )(scal, x_bf16, sf_flat, disp_up, coords)

    return out[:, :, :HW].reshape(B, C, H, W)


# ----------------------------------------------------------------------------
# pure-JAX reference (mirrors the PyTorch forward) for a sanity check
# ----------------------------------------------------------------------------
def warp_sceneflow_reference(x, sceneflow, disp, k1, input_size):
    B, C, H, W = x.shape
    _, _, hd, wd = disp.shape
    Ry = _resize_matrix_align_corners(H, hd)
    Rx = _resize_matrix_align_corners(W, wd)
    disp_r = jnp.einsum('ya,xb,nab->nyx', Ry, Rx, disp[:, 0].astype(jnp.float32)) * float(wd)

    K3, invK3, fx = _prepare_camera(x.shape, k1, input_size)
    mask = (disp_r > 0).astype(jnp.float32)
    depth = fx[:, None, None] * BASELINE / (disp_r + (1.0 - mask))

    xs = jnp.arange(W, dtype=jnp.float32)
    ys = jnp.arange(H, dtype=jnp.float32)
    xg, yg = jnp.meshgrid(xs, ys, indexing='xy')
    pix = jnp.stack([xg, yg, jnp.ones_like(xg)], 0)                  # [3, H, W]
    cam = jnp.einsum('bij,jhw->bihw', invK3, pix) * depth[:, None]
    pts = cam + sceneflow.astype(jnp.float32)                        # mode='sf'
    proj = jnp.einsum('bij,bjhw->bihw', K3, pts)

    gx = proj[:, 0] / (proj[:, 2] + EPS)
    gy = proj[:, 1] / (proj[:, 2] + EPS)
    gx = (gx / float(W - 1) - 0.5) * 2.0
    gy = (gy / float(H - 1) - 0.5) * 2.0

    ix = ((gx + 1.0) * W - 1.0) * 0.5
    iy = ((gy + 1.0) * H - 1.0) * 0.5
    x0 = jnp.floor(ix)
    y0 = jnp.floor(iy)

    xflat = x.reshape(B, C, H * W).astype(jnp.float32)
    out = jnp.zeros((B, C, H, W), jnp.float32)
    for dxc, dyc in ((0, 0), (1, 0), (0, 1), (1, 1)):
        xc = x0 + dxc
        yc = y0 + dyc
        w = (1.0 - jnp.abs(ix - xc)) * (1.0 - jnp.abs(iy - yc))
        valid = ((xc >= 0) & (xc < W) & (yc >= 0) & (yc < H)).astype(jnp.float32)
        xcc = jnp.clip(xc, 0, W - 1).astype(jnp.int32)
        ycc = jnp.clip(yc, 0, H - 1).astype(jnp.int32)
        idx = jnp.broadcast_to((ycc * W + xcc).reshape(B, 1, H * W), (B, C, H * W))
        g = jnp.take_along_axis(xflat, idx, axis=2).reshape(B, C, H, W)
        out = out + g * (w * valid)[:, None]
    return out


if __name__ == "__main__":
    key = jax.random.PRNGKey(0)
    kx, kd, ks = jax.random.split(key, 3)

    B, C, H, W = 2, 3, 16, 16
    hd, wd = 8, 8

    x = jax.random.normal(kx, (B, C, H, W), dtype=jnp.float32)
    disp = jax.random.uniform(kd, (B, 1, hd, wd), dtype=jnp.float32,
                              minval=1.0, maxval=4.0)
    sceneflow = 0.02 * jax.random.normal(ks, (B, 3, H, W), dtype=jnp.float32)

    # 3x3 intrinsics for the original 32x32 input (mode='sf' projects with K @ [3,HW])
    k1 = jnp.tile(jnp.array([[30.0, 0.0, 16.0],
                             [0.0, 30.0, 16.0],
                             [0.0, 0.0, 1.0]], dtype=jnp.float32), (B, 1, 1))
    # original input size (h, w) per batch
    input_size = jnp.full((B, 2), 32.0, dtype=jnp.float32)

    out = warp_sceneflow_pallas(x, sceneflow, disp, k1, input_size)
    out = jax.block_until_ready(out)

    ref = warp_sceneflow_reference(x, sceneflow, disp, k1, input_size)
    # tolerance reflects bf16 source/sampling weights on the MXU + EUP reciprocal
    np.testing.assert_allclose(np.asarray(out), np.asarray(ref), rtol=5e-2, atol=5e-2)

    print("KERNEL_OK")
</pallas_src>

<mosaic_0001>
module attributes {stable_mosaic.version = 11 : i64} {
  func.func @_warp_sf_kernel(%arg0: i32, %arg1: i32, %arg2: memref<2x19xf32, #tpu.memory_space<smem>>, %arg3: memref<1x3x16x16xbf16, #tpu.memory_space<vmem>>, %arg4: memref<1x3x256xf32, #tpu.memory_space<vmem>>, %arg5: memref<1x1x256xf32, #tpu.memory_space<vmem>>, %arg6: memref<2x256xf32, #tpu.memory_space<vmem>>, %arg7: memref<1x3x256xf32, #tpu.memory_space<vmem>>) attributes {dimension_semantics = [#tpu.dimension_semantics<parallel>, #tpu.dimension_semantics<parallel>], iteration_bounds = array<i64: 2, 1>, scalar_prefetch = 1 : i64, scratch_operands = 0 : i64, tpu.core_type = #tpu.core_type<tc>, window_params = [{pipeline_mode = #tpu.pipeline_mode<synchronous>, transform_indices = @transform_0, window_bounds = array<i64: 1, 3, 16, 16>}, {transform_indices = @transform_1, window_bounds = array<i64: 1, 3, 256>}, {transform_indices = @transform_2, window_bounds = array<i64: 1, 1, 256>}, {transform_indices = @transform_3, window_bounds = array<i64: 2, 256>}, {transform_indices = @transform_4, window_bounds = array<i64: 1, 3, 256>}]} {
    %c0 = arith.constant 0 : index
    %c0_0 = arith.constant 0 : index
    %c0_1 = arith.constant 0 : index
    %0 = vector.load %arg5[%c0, %c0_0, %c0_1] : memref<1x1x256xf32, #tpu.memory_space<vmem>>, vector<1x1x256xf32>
    %1 = vector.shape_cast %0 : vector<1x1x256xf32> to vector<1x256xf32>
    %2 = arith.index_cast %arg0 : i32 to index
    %c18 = arith.constant 18 : index
    %3 = memref.load %arg2[%2, %c18] : memref<2x19xf32, #tpu.memory_space<smem>>
    %cst = arith.constant 0.000000e+00 : f32
    %4 = vector.broadcast %cst : f32 to vector<1x256xf32>
    %5 = arith.cmpf ogt, %1, %4 : vector<1x256xf32>
    %6 = arith.extui %5 : vector<1x256xi1> to vector<1x256xi32>
    %7 = arith.sitofp %6 : vector<1x256xi32> to vector<1x256xf32>
    %cst_2 = arith.constant 5.400000e-01 : f32
    %8 = arith.mulf %3, %cst_2 : f32
    %cst_3 = arith.constant 1.000000e+00 : f32
    %9 = vector.broadcast %cst_3 : f32 to vector<1x256xf32>
    %10 = arith.subf %9, %7 : vector<1x256xf32>
    %11 = arith.addf %1, %10 : vector<1x256xf32>
    %12 = tpu.reciprocal %11 {approx = true} : vector<1x256xf32> -> vector<1x256xf32>
    %13 = arith.mulf %11, %12 : vector<1x256xf32>
    %cst_4 = arith.constant 2.000000e+00 : f32
    %14 = vector.broadcast %cst_4 : f32 to vector<1x256xf32>
    %15 = arith.subf %14, %13 : vector<1x256xf32>
    %16 = arith.mulf %12, %15 : vector<1x256xf32>
    %17 = vector.broadcast %8 : f32 to vector<1x256xf32>
    %18 = arith.mulf %17, %16 : vector<1x256xf32>
    %c0_5 = arith.constant 0 : index
    %c0_6 = arith.constant 0 : index
    %19 = vector.load %arg6[%c0_5, %c0_6] : memref<2x256xf32, #tpu.memory_space<vmem>>, vector<1x256xf32>
    %c1 = arith.constant 1 : index
    %c0_7 = arith.constant 0 : index
    %20 = vector.load %arg6[%c1, %c0_7] : memref<2x256xf32, #tpu.memory_space<vmem>>, vector<1x256xf32>
    %21 = arith.index_cast %arg0 : i32 to index
    %c0_8 = arith.constant 0 : index
    %22 = memref.load %arg2[%21, %c0_8] : memref<2x19xf32, #tpu.memory_space<smem>>
    %23 = arith.index_cast %arg0 : i32 to index
    %c1_9 = arith.constant 1 : index
    %24 = memref.load %arg2[%23, %c1_9] : memref<2x19xf32, #tpu.memory_space<smem>>
    %25 = arith.index_cast %arg0 : i32 to index
    %c2 = arith.constant 2 : index
    %26 = memref.load %arg2[%25, %c2] : memref<2x19xf32, #tpu.memory_space<smem>>
    %27 = arith.index_cast %arg0 : i32 to index
    %c3 = arith.constant 3 : index
    %28 = memref.load %arg2[%27, %c3] : memref<2x19xf32, #tpu.memory_space<smem>>
    %29 = arith.index_cast %arg0 : i32 to index
    %c4 = arith.constant 4 : index
    %30 = memref.load %arg2[%29, %c4] : memref<2x19xf32, #tpu.memory_space<smem>>
    %31 = arith.index_cast %arg0 : i32 to index
    %c5 = arith.constant 5 : index
    %32 = memref.load %arg2[%31, %c5] : memref<2x19xf32, #tpu.memory_space<smem>>
    %33 = arith.index_cast %arg0 : i32 to index
    %c6 = arith.constant 6 : index
    %34 = memref.load %arg2[%33, %c6] : memref<2x19xf32, #tpu.memory_space<smem>>
    %35 = arith.index_cast %arg0 : i32 to index
    %c7 = arith.constant 7 : index
    %36 = memref.load %arg2[%35, %c7] : memref<2x19xf32, #tpu.memory_space<smem>>
    %37 = arith.index_cast %arg0 : i32 to index
    %c8 = arith.constant 8 : index
    %38 = memref.load %arg2[%37, %c8] : memref<2x19xf32, #tpu.memory_space<smem>>
    %39 = vector.broadcast %22 : f32 to vector<1x256xf32>
    %40 = arith.mulf %39, %19 : vector<1x256xf32>
    %41 = vector.broadcast %24 : f32 to vector<1x256xf32>
    %42 = arith.mulf %41, %20 : vector<1x256xf32>
    %43 = arith.addf %40, %42 : vector<1x256xf32>
    %44 = vector.broadcast %26 : f32 to vector<1x256xf32>
    %45 = arith.addf %43, %44 : vector<1x256xf32>
    %46 = arith.mulf %45, %18 : vector<1x256xf32>
    %47 = vector.broadcast %28 : f32 to vector<1x256xf32>
    %48 = arith.mulf %47, %19 : vector<1x256xf32>
    %49 = vector.broadcast %30 : f32 to vector<1x256xf32>
    %50 = arith.mulf %49, %20 : vector<1x256xf32>
    %51 = arith.addf %48, %50 : vector<1x256xf32>
    %52 = vector.broadcast %32 : f32 to vector<1x256xf32>
    %53 = arith.addf %51, %52 : vector<1x256xf32>
    %54 = arith.mulf %53, %18 : vector<1x256xf32>
    %55 = vector.broadcast %34 : f32 to vector<1x256xf32>
    %56 = arith.mulf %55, %19 : vector<1x256xf32>
    %57 = vector.broadcast %36 : f32 to vector<1x256xf32>
    %58 = arith.mulf %57, %20 : vector<1x256xf32>
    %59 = arith.addf %56, %58 : vector<1x256xf32>
    %60 = vector.broadcast %38 : f32 to vector<1x256xf32>
    %61 = arith.addf %59, %60 : vector<1x256xf32>
    %62 = arith.mulf %61, %18 : vector<1x256xf32>
    %c0_10 = arith.constant 0 : index
    %c0_11 = arith.constant 0 : index
    %c0_12 = arith.constant 0 : index
    %63 = vector.load %arg4[%c0_10, %c0_11, %c0_12] : memref<1x3x256xf32, #tpu.memory_space<vmem>>, vector<1x1x256xf32>
    %64 = vector.shape_cast %63 : vector<1x1x256xf32> to vector<1x256xf32>
    %65 = arith.addf %46, %64 : vector<1x256xf32>
    %c0_13 = arith.constant 0 : index
    %c1_14 = arith.constant 1 : index
    %c0_15 = arith.constant 0 : index
    %66 = vector.load %arg4[%c0_13, %c1_14, %c0_15] : memref<1x3x256xf32, #tpu.memory_space<vmem>>, vector<1x1x256xf32>
    %67 = vector.shape_cast %66 : vector<1x1x256xf32> to vector<1x256xf32>
    %68 = arith.addf %54, %67 : vector<1x256xf32>
    %c0_16 = arith.constant 0 : index
    %c2_17 = arith.constant 2 : index
    %c0_18 = arith.constant 0 : index
    %69 = vector.load %arg4[%c0_16, %c2_17, %c0_18] : memref<1x3x256xf32, #tpu.memory_space<vmem>>, vector<1x1x256xf32>
    %70 = vector.shape_cast %69 : vector<1x1x256xf32> to vector<1x256xf32>
    %71 = arith.addf %62, %70 : vector<1x256xf32>
    %72 = arith.index_cast %arg0 : i32 to index
    %c9 = arith.constant 9 : index
    %73 = memref.load %arg2[%72, %c9] : memref<2x19xf32, #tpu.memory_space<smem>>
    %74 = arith.index_cast %arg0 : i32 to index
    %c10 = arith.constant 10 : index
    %75 = memref.load %arg2[%74, %c10] : memref<2x19xf32, #tpu.memory_space<smem>>
    %76 = arith.index_cast %arg0 : i32 to index
    %c11 = arith.constant 11 : index
    %77 = memref.load %arg2[%76, %c11] : memref<2x19xf32, #tpu.memory_space<smem>>
    %78 = arith.index_cast %arg0 : i32 to index
    %c12 = arith.constant 12 : index
    %79 = memref.load %arg2[%78, %c12] : memref<2x19xf32, #tpu.memory_space<smem>>
    %80 = arith.index_cast %arg0 : i32 to index
    %c13 = arith.constant 13 : index
    %81 = memref.load %arg2[%80, %c13] : memref<2x19xf32, #tpu.memory_space<smem>>
    %82 = arith.index_cast %arg0 : i32 to index
    %c14 = arith.constant 14 : index
    %83 = memref.load %arg2[%82, %c14] : memref<2x19xf32, #tpu.memory_space<smem>>
    %84 = arith.index_cast %arg0 : i32 to index
    %c15 = arith.constant 15 : index
    %85 = memref.load %arg2[%84, %c15] : memref<2x19xf32, #tpu.memory_space<smem>>
    %86 = arith.index_cast %arg0 : i32 to index
    %c16 = arith.constant 16 : index
    %87 = memref.load %arg2[%86, %c16] : memref<2x19xf32, #tpu.memory_space<smem>>
    %88 = arith.index_cast %arg0 : i32 to index
    %c17 = arith.constant 17 : index
    %89 = memref.load %arg2[%88, %c17] : memref<2x19xf32, #tpu.memory_space<smem>>
    %90 = vector.broadcast %73 : f32 to vector<1x256xf32>
    %91 = arith.mulf %90, %65 : vector<1x256xf32>
    %92 = vector.broadcast %75 : f32 to vector<1x256xf32>
    %93 = arith.mulf %92, %68 : vector<1x256xf32>
    %94 = arith.addf %91, %93 : vector<1x256xf32>
    %95 = vector.broadcast %77 : f32 to vector<1x256xf32>
    %96 = arith.mulf %95, %71 : vector<1x256xf32>
    %97 = arith.addf %94, %96 : vector<1x256xf32>
    %98 = vector.broadcast %79 : f32 to vector<1x256xf32>
    %99 = arith.mulf %98, %65 : vector<1x256xf32>
    %100 = vector.broadcast %81 : f32 to vector<1x256xf32>
    %101 = arith.mulf %100, %68 : vector<1x256xf32>
    %102 = arith.addf %99, %101 : vector<1x256xf32>
    %103 = vector.broadcast %83 : f32 to vector<1x256xf32>
    %104 = arith.mulf %103, %71 : vector<1x256xf32>
    %105 = arith.addf %102, %104 : vector<1x256xf32>
    %106 = vector.broadcast %85 : f32 to vector<1x256xf32>
    %107 = arith.mulf %106, %65 : vector<1x256xf32>
    %108 = vector.broadcast %87 : f32 to vector<1x256xf32>
    %109 = arith.mulf %108, %68 : vector<1x256xf32>
    %110 = arith.addf %107, %109 : vector<1x256xf32>
    %111 = vector.broadcast %89 : f32 to vector<1x256xf32>
    %112 = arith.mulf %111, %71 : vector<1x256xf32>
    %113 = arith.addf %110, %112 : vector<1x256xf32>
    %cst_19 = arith.constant 1.000000e-07 : f32
    %114 = vector.broadcast %cst_19 : f32 to vector<1x256xf32>
    %115 = arith.addf %113, %114 : vector<1x256xf32>
    %116 = tpu.reciprocal %115 {approx = true} : vector<1x256xf32> -> vector<1x256xf32>
    %117 = arith.mulf %115, %116 : vector<1x256xf32>
    %cst_20 = arith.constant 2.000000e+00 : f32
    %118 = vector.broadcast %cst_20 : f32 to vector<1x256xf32>
    %119 = arith.subf %118, %117 : vector<1x256xf32>
    %120 = arith.mulf %116, %119 : vector<1x256xf32>
    %121 = arith.mulf %97, %120 : vector<1x256xf32>
    %cst_21 = arith.constant 0.0666666701 : f32
    %122 = vector.broadcast %cst_21 : f32 to vector<1x256xf32>
    %123 = arith.mulf %121, %122 : vector<1x256xf32>
    %cst_22 = arith.constant 5.000000e-01 : f32
    %124 = vector.broadcast %cst_22 : f32 to vector<1x256xf32>
    %125 = arith.subf %123, %124 : vector<1x256xf32>
    %cst_23 = arith.constant 2.000000e+00 : f32
    %126 = vector.broadcast %cst_23 : f32 to vector<1x256xf32>
    %127 = arith.mulf %125, %126 : vector<1x256xf32>
    %128 = arith.mulf %105, %120 : vector<1x256xf32>
    %cst_24 = arith.constant 0.0666666701 : f32
    %129 = vector.broadcast %cst_24 : f32 to vector<1x256xf32>
    %130 = arith.mulf %128, %129 : vector<1x256xf32>
    %cst_25 = arith.constant 5.000000e-01 : f32
    %131 = vector.broadcast %cst_25 : f32 to vector<1x256xf32>
    %132 = arith.subf %130, %131 : vector<1x256xf32>
    %cst_26 = arith.constant 2.000000e+00 : f32
    %133 = vector.broadcast %cst_26 : f32 to vector<1x256xf32>
    %134 = arith.mulf %132, %133 : vector<1x256xf32>
    %cst_27 = arith.constant 1.000000e+00 : f32
    %135 = vector.broadcast %cst_27 : f32 to vector<1x256xf32>
    %136 = arith.addf %127, %135 : vector<1x256xf32>
    %cst_28 = arith.constant 1.600000e+01 : f32
    %137 = vector.broadcast %cst_28 : f32 to vector<1x256xf32>
    %138 = arith.mulf %136, %137 : vector<1x256xf32>
    %cst_29 = arith.constant 1.000000e+00 : f32
    %139 = vector.broadcast %cst_29 : f32 to vector<1x256xf32>
    %140 = arith.subf %138, %139 : vector<1x256xf32>
    %cst_30 = arith.constant 5.000000e-01 : f32
    %141 = vector.broadcast %cst_30 : f32 to vector<1x256xf32>
    %142 = arith.mulf %140, %141 : vector<1x256xf32>
    %cst_31 = arith.constant 1.000000e+00 : f32
    %143 = vector.broadcast %cst_31 : f32 to vector<1x256xf32>
    %144 = arith.addf %134, %143 : vector<1x256xf32>
    %cst_32 = arith.constant 1.600000e+01 : f32
    %145 = vector.broadcast %cst_32 : f32 to vector<1x256xf32>
    %146 = arith.mulf %144, %145 : vector<1x256xf32>
    %cst_33 = arith.constant 1.000000e+00 : f32
    %147 = vector.broadcast %cst_33 : f32 to vector<1x256xf32>
    %148 = arith.subf %146, %147 : vector<1x256xf32>
    %cst_34 = arith.constant 5.000000e-01 : f32
    %149 = vector.broadcast %cst_34 : f32 to vector<1x256xf32>
    %150 = arith.mulf %148, %149 : vector<1x256xf32>
    %cst_35 = arith.constant -2.000000e+00 : f32
    %cst_36 = arith.constant 1.700000e+01 : f32
    %151 = vector.broadcast %cst_35 : f32 to vector<1x256xf32>
    %152 = arith.maximumf %151, %142 : vector<1x256xf32>
    %153 = vector.broadcast %cst_36 : f32 to vector<1x256xf32>
    %154 = arith.minimumf %153, %152 : vector<1x256xf32>
    %cst_37 = arith.constant -2.000000e+00 : f32
    %cst_38 = arith.constant 1.700000e+01 : f32
    %155 = vector.broadcast %cst_37 : f32 to vector<1x256xf32>
    %156 = arith.maximumf %155, %150 : vector<1x256xf32>
    %157 = vector.broadcast %cst_38 : f32 to vector<1x256xf32>
    %158 = arith.minimumf %157, %156 : vector<1x256xf32>
    %159 = tpu.iota {dimensions = array<i32: 0>} : vector<16x256xi32>
    %160 = arith.sitofp %159 : vector<16x256xi32> to vector<16x256xf32>
    %161 = tpu.iota {dimensions = array<i32: 0>} : vector<16x256xi32>
    %162 = arith.sitofp %161 : vector<16x256xi32> to vector<16x256xf32>
    %163 = vector.broadcast %158 : vector<1x256xf32> to vector<16x256xf32>
    %164 = arith.subf %160, %163 : vector<16x256xf32>
    %165 = math.absf %164 : vector<16x256xf32>
    %cst_39 = arith.constant 1.000000e+00 : f32
    %166 = vector.broadcast %cst_39 : f32 to vector<16x256xf32>
    %167 = arith.subf %166, %165 : vector<16x256xf32>
    %cst_40 = arith.constant 0.000000e+00 : f32
    %168 = vector.broadcast %cst_40 : f32 to vector<16x256xf32>
    %169 = arith.maximumf %167, %168 : vector<16x256xf32>
    %170 = vector.broadcast %154 : vector<1x256xf32> to vector<16x256xf32>
    %171 = arith.subf %162, %170 : vector<16x256xf32>
    %172 = math.absf %171 : vector<16x256xf32>
    %cst_41 = arith.constant 1.000000e+00 : f32
    %173 = vector.broadcast %cst_41 : f32 to vector<16x256xf32>
    %174 = arith.subf %173, %172 : vector<16x256xf32>
    %cst_42 = arith.constant 0.000000e+00 : f32
    %175 = vector.broadcast %cst_42 : f32 to vector<16x256xf32>
    %176 = arith.maximumf %174, %175 : vector<16x256xf32>
    %177 = arith.truncf %176 : vector<16x256xf32> to vector<16x256xbf16>
    %c0_43 = arith.constant 0 : index
    %c0_44 = arith.constant 0 : index
    %c0_45 = arith.constant 0 : index
    %c0_46 = arith.constant 0 : index
    %178 = vector.load %arg3[%c0_43, %c0_44, %c0_45, %c0_46] : memref<1x3x16x16xbf16, #tpu.memory_space<vmem>>, vector<1x1x16x16xbf16>
    %179 = vector.shape_cast %178 : vector<1x1x16x16xbf16> to vector<16x16xbf16>
    %cst_47 = arith.constant dense<0.000000e+00> : vector<16x256xf32>
    %180 = tpu.matmul %179, %177, %cst_47 {dimension_numbers = #tpu.dot_dimension_numbers<[1], [0], [0], [1], [0, 0, 1, 1], [], []>} : vector<16x16xbf16>, vector<16x256xbf16>, vector<16x256xf32> -> vector<16x256xf32>
    %181 = arith.mulf %180, %169 : vector<16x256xf32>
    %cst_48 = arith.constant dense<0.000000e+00> : vector<256xf32>
    %182 = vector.multi_reduction <add>, %181, %cst_48 [0] : vector<16x256xf32> to vector<256xf32>
    %183 = vector.shape_cast %182 : vector<256xf32> to vector<1x256xf32>
    %c0_49 = arith.constant 0 : index
    %c0_50 = arith.constant 0 : index
    %c0_51 = arith.constant 0 : index
    %184 = vector.load %arg7[%c0_49, %c0_50, %c0_51] : memref<1x3x256xf32, #tpu.memory_space<vmem>>, vector<1x1x256xf32>
    %185 = vector.shape_cast %184 : vector<1x1x256xf32> to vector<1x256xf32>
    %186 = vector.shape_cast %183 : vector<1x256xf32> to vector<1x1x256xf32>
    tpu.vector_store %arg7[%c0_49, %c0_50, %c0_51], %186 {strides = array<i32>} : memref<1x3x256xf32, #tpu.memory_space<vmem>>, vector<1x1x256xf32>,
    %c0_52 = arith.constant 0 : index
    %c1_53 = arith.constant 1 : index
    %c0_54 = arith.constant 0 : index
    %c0_55 = arith.constant 0 : index
    %187 = vector.load %arg3[%c0_52, %c1_53, %c0_54, %c0_55] : memref<1x3x16x16xbf16, #tpu.memory_space<vmem>>, vector<1x1x16x16xbf16>
    %188 = vector.shape_cast %187 : vector<1x1x16x16xbf16> to vector<16x16xbf16>
    %cst_56 = arith.constant dense<0.000000e+00> : vector<16x256xf32>
    %189 = tpu.matmul %188, %177, %cst_56 {dimension_numbers = #tpu.dot_dimension_numbers<[1], [0], [0], [1], [0, 0, 1, 1], [], []>} : vector<16x16xbf16>, vector<16x256xbf16>, vector<16x256xf32> -> vector<16x256xf32>
    %190 = arith.mulf %189, %169 : vector<16x256xf32>
    %cst_57 = arith.constant dense<0.000000e+00> : vector<256xf32>
    %191 = vector.multi_reduction <add>, %190, %cst_57 [0] : vector<16x256xf32> to vector<256xf32>
    %192 = vector.shape_cast %191 : vector<256xf32> to vector<1x256xf32>
    %c0_58 = arith.constant 0 : index
    %c1_59 = arith.constant 1 : index
    %c0_60 = arith.constant 0 : index
    %193 = vector.load %arg7[%c0_58, %c1_59, %c0_60] : memref<1x3x256xf32, #tpu.memory_space<vmem>>, vector<1x1x256xf32>
    %194 = vector.shape_cast %193 : vector<1x1x256xf32> to vector<1x256xf32>
    %195 = vector.shape_cast %192 : vector<1x256xf32> to vector<1x1x256xf32>
    tpu.vector_store %arg7[%c0_58, %c1_59, %c0_60], %195 {strides = array<i32>} : memref<1x3x256xf32, #tpu.memory_space<vmem>>, vector<1x1x256xf32>,
    %c0_61 = arith.constant 0 : index
    %c2_62 = arith.constant 2 : index
    %c0_63 = arith.constant 0 : index
    %c0_64 = arith.constant 0 : index
    %196 = vector.load %arg3[%c0_61, %c2_62, %c0_63, %c0_64] : memref<1x3x16x16xbf16, #tpu.memory_space<vmem>>, vector<1x1x16x16xbf16>
    %197 = vector.shape_cast %196 : vector<1x1x16x16xbf16> to vector<16x16xbf16>
    %cst_65 = arith.constant dense<0.000000e+00> : vector<16x256xf32>
    %198 = tpu.matmul %197, %177, %cst_65 {dimension_numbers = #tpu.dot_dimension_numbers<[1], [0], [0], [1], [0, 0, 1, 1], [], []>} : vector<16x16xbf16>, vector<16x256xbf16>, vector<16x256xf32> -> vector<16x256xf32>
    %199 = arith.mulf %198, %169 : vector<16x256xf32>
    %cst_66 = arith.constant dense<0.000000e+00> : vector<256xf32>
    %200 = vector.multi_reduction <add>, %199, %cst_66 [0] : vector<16x256xf32> to vector<256xf32>
    %201 = vector.shape_cast %200 : vector<256xf32> to vector<1x256xf32>
    %c0_67 = arith.constant 0 : index
    %c2_68 = arith.constant 2 : index
    %c0_69 = arith.constant 0 : index
    %202 = vector.load %arg7[%c0_67, %c2_68, %c0_69] : memref<1x3x256xf32, #tpu.memory_space<vmem>>, vector<1x1x256xf32>
    %203 = vector.shape_cast %202 : vector<1x1x256xf32> to vector<1x256xf32>
    %204 = vector.shape_cast %201 : vector<1x256xf32> to vector<1x1x256xf32>
    tpu.vector_store %arg7[%c0_67, %c2_68, %c0_69], %204 {strides = array<i32>} : memref<1x3x256xf32, #tpu.memory_space<vmem>>, vector<1x1x256xf32>,
    return
  }
  func.func @transform_0(%arg0: i32, %arg1: i32, %arg2: memref<2x19xf32, #tpu.memory_space<smem>>) -> (i32, i32, i32, i32) {
    %c0_i32 = arith.constant 0 : i32
    %c0_i32_0 = arith.constant 0 : i32
    %c0_i32_1 = arith.constant 0 : i32
    %c0_i32_2 = arith.constant 0 : i32
    return %arg0, %c0_i32, %c0_i32_0, %c0_i32_1 : i32, i32, i32, i32
  }
  func.func @transform_1(%arg0: i32, %arg1: i32, %arg2: memref<2x19xf32, #tpu.memory_space<smem>>) -> (i32, i32, i32) {
    %c0_i32 = arith.constant 0 : i32
    %c0_i32_0 = arith.constant 0 : i32
    return %arg0, %c0_i32, %arg1 : i32, i32, i32
  }
  func.func @transform_2(%arg0: i32, %arg1: i32, %arg2: memref<2x19xf32, #tpu.memory_space<smem>>) -> (i32, i32, i32) {
    %c0_i32 = arith.constant 0 : i32
    %c0_i32_0 = arith.constant 0 : i32
    return %arg0, %c0_i32, %arg1 : i32, i32, i32
  }
  func.func @transform_3(%arg0: i32, %arg1: i32, %arg2: memref<2x19xf32, #tpu.memory_space<smem>>) -> (i32, i32) {
    %c0_i32 = arith.constant 0 : i32
    %c0_i32_0 = arith.constant 0 : i32
    return %c0_i32, %arg1 : i32, i32
  }
  func.func @transform_4(%arg0: i32, %arg1: i32, %arg2: memref<2x19xf32, #tpu.memory_space<smem>>) -> (i32, i32, i32) {
    %c0_i32 = arith.constant 0 : i32
    %c0_i32_0 = arith.constant 0 : i32
    return %arg0, %c0_i32, %arg1 : i32, i32, i32
  }
}

</mosaic_0001>

<llo_original>
// kernel: tpu_custom_call.1
$region0: #{tpu_custom_call.1}
  #allocation0 [shape = 'u32[]', space=smem, size = 0x4, offset = 0x4, fixed_abs, tag = 'smem constant byte address 0x4 - core index']
  #allocation1 [shape = 'u32[144,128]{1,0:T(1,128)}', space=vmem, size = 0x12000, scoped, tag = 'internal scratch']
  #allocation2 [shape = 's32[1]{0}', space=sflag, size = 0x4, scoped, tag = 'scoped memory for tpu_custom_call.1']
  #allocation3 [shape = 'u8[1024]{0}', space=smem, size = 0x400, scoped, tag = 'prefetched SMEM operand 0']
  %s0 = inlined_call_operand.vmem [shape: f32[2,19], index: 0, kind: input, shape index: {}]
  %s1 = inlined_call_operand.hbm [shape: bf16[2,3,16,16], index: 1, kind: input, shape index: {}]
  %s2 = inlined_call_operand.vmem [shape: f32[2,3,256], index: 2, kind: input, shape index: {}]
  %s3 = inlined_call_operand.vmem [shape: f32[2,1,256], index: 3, kind: input, shape index: {}]
  %s4 = inlined_call_operand.vmem [shape: f32[2,256], index: 4, kind: input, shape index: {}]
  %s5 = inlined_call_operand.vmem [shape: f32[2,3,256], index: 5, kind: output, shape index: {}]
  %s6 = sld [smem:[#allocation0]]
  $region53: #{tpu_custom_call.1} parent=0
    _
  %s8 = ssub.s32 1, %s6
  %s9 = scalar_select 0, %s8, %s6
  %s10 = sshll.u32 %s0, 4
  %s11 = int_to_ptr.vmem [resolvable:$true] %s10
  %13 = dma.vmem_to_smem %s11, 32, [#allocation3], [#allocation2]
  %14 = dma.done [#allocation2], 32
  %15 = sfence
  $region1: #{tpu_custom_call.1} parent=0
    #allocation4 [shape = 'u8[12288]{0}', space=vmem, size = 0x3000, scoped, tag = 'input window, operand 1, single buffered']
    #allocation5 [shape = 's32[2]{0}', space=sflag, size = 0x8, scoped, tag = 'scoped memory for tpu_custom_call.1']
    %16 = vsyncpa [#allocation5], 0
    loop: start=0, step=1, limit=4
    $region2: #{tpu_custom_call.1} parent=1 // loop_pre_header
      _
    $region3: #{tpu_custom_call.1} parent=1 // loop_header
      %s18 = sphi 0, %s22
      %p19 = scmp.ge.s32.totalorder %s18, 4
      %s25 = sphi 0, %s37
      %s26 = sphi 0, %s33
      %s27 = sphi 0, %s25
      %s28 = sphi 0, %s26
      %s29 = sphi 0, %s27
      %s30 = sphi 0, %s28
      %s40 = sphi 0, %s42
      %s43 = sphi 0, %s40
      %s44 = sphi 0, %s43
      %s60 = sphi 0, %s44
      %s68 = sphi 0, %s70
      %s71 = sphi 0, %s68
      %s72 = sphi 0, %s71
      %s88 = sphi 0, %s72
      %s96 = sphi 0, %s98
      %s99 = sphi 0, %s96
      %s100 = sphi 0, %s99
      %s116 = sphi 0, %s100
      %s122 = sphi 0, %s124
      %s125 = sphi 0, %s122
      %s126 = sphi 0, %s125
      %s142 = sphi 0, %s126
      %s150 = sphi 0, %s152
      %s153 = sphi 0, %s150
      %s154 = sphi 0, %s153
      %s170 = sphi 0, %s154
    $region4: #{tpu_custom_call.1} parent=1 // loop_header_branch
      %21 = sbr.rel (%p19) target = $region8
    $region5: #{tpu_custom_call.1} parent=1 // loop_body
      %s23 = ssub.s32 %s18, 1
      %s24 = ssub.s32 %s18, 2
      %s31 = sadd.s32 1, %s26
      %p32 = scmp.ge.s32.totalorder %s31, 1
      %s33 = scalar_select %p32, 0, %s31
      %s34 = sadd.s32 1, %s25
      %s35 = scalar_select %p32, %s34, %s25
      %p36 = scmp.ge.s32.totalorder %s35, 2
      %s37 = scalar_select %p36, 0, %s35
      %s38 = ssub.s32 %s25, %s37
      %p39 = scmp.eq.s32.totalorder %s38, 0
      %s41 = sadd.s32 %s40, 1
      %s42 = scalar_select %p39, %s40, %s41
      %p45 = pneg %p39
      %p46 = scmp.eq.s32.totalorder %s18, 1
      %p47 = por %p45, %p46
      %p48 = scmp.ne.s32.totalorder %s40, %s43
      %p49 = scmp.eq.s32.totalorder %s18, 0
      %p50 = por %p48, %p49
      %p51 = scmp.ne.s32.totalorder %s40, %s43
      %p52 = scmp.eq.s32.totalorder %s23, 1
      %p53 = por %p51, %p52
      %p54 = scmp.ne.s32.totalorder %s43, %s44
      %p55 = scmp.eq.s32.totalorder %s23, 0
      %p56 = por %p54, %p55
      %p57 = scmp.ne.s32.totalorder %s43, %s44
      %p58 = scmp.eq.s32.totalorder %s24, 1
      %p59 = por %p57, %p58
      %p61 = scmp.ne.s32.totalorder %s44, %s60
      %p62 = scmp.eq.s32.totalorder %s24, 0
      %p63 = por %p61, %p62
      %s64 = ssub.s32 %s25, %s37
      %s65 = ssub.s32 %s26, %s33
      %s66 = sor.u32 %s64, %s65
      %p67 = scmp.eq.s32.totalorder %s66, 0
      %s69 = sadd.s32 %s68, 1
      %s70 = scalar_select %p67, %s68, %s69
      %p73 = pneg %p67
      %p74 = scmp.eq.s32.totalorder %s18, 1
      %p75 = por %p73, %p74
      %p76 = scmp.ne.s32.totalorder %s68, %s71
      %p77 = scmp.eq.s32.totalorder %s18, 0
      %p78 = por %p76, %p77
      %p79 = scmp.ne.s32.totalorder %s68, %s71
      %p80 = scmp.eq.s32.totalorder %s23, 1
      %p81 = por %p79, %p80
      %p82 = scmp.ne.s32.totalorder %s71, %s72
      %p83 = scmp.eq.s32.totalorder %s23, 0
      %p84 = por %p82, %p83
      %p85 = scmp.ne.s32.totalorder %s71, %s72
      %p86 = scmp.eq.s32.totalorder %s24, 1
      %p87 = por %p85, %p86
      %p89 = scmp.ne.s32.totalorder %s72, %s88
      %p90 = scmp.eq.s32.totalorder %s24, 0
      %p91 = por %p89, %p90
      %s92 = ssub.s32 %s25, %s37
      %s93 = ssub.s32 %s26, %s33
      %s94 = sor.u32 %s92, %s93
      %p95 = scmp.eq.s32.totalorder %s94, 0
      %s97 = sadd.s32 %s96, 1
      %s98 = scalar_select %p95, %s96, %s97
      %p101 = pneg %p95
      %p102 = scmp.eq.s32.totalorder %s18, 1
      %p103 = por %p101, %p102
      %p104 = scmp.ne.s32.totalorder %s96, %s99
      %p105 = scmp.eq.s32.totalorder %s18, 0
      %p106 = por %p104, %p105
      %p107 = scmp.ne.s32.totalorder %s96, %s99
      %p108 = scmp.eq.s32.totalorder %s23, 1
      %p109 = por %p107, %p108
      %p110 = scmp.ne.s32.totalorder %s99, %s100
      %p111 = scmp.eq.s32.totalorder %s23, 0
      %p112 = por %p110, %p111
      %p113 = scmp.ne.s32.totalorder %s99, %s100
      %p114 = scmp.eq.s32.totalorder %s24, 1
      %p115 = por %p113, %p114
      %p117 = scmp.ne.s32.totalorder %s100, %s116
      %p118 = scmp.eq.s32.totalorder %s24, 0
      %p119 = por %p117, %p118
      %s120 = ssub.s32 %s26, %s33
      %p121 = scmp.eq.s32.totalorder %s120, 0
      %s123 = sadd.s32 %s122, 1
      %s124 = scalar_select %p121, %s122, %s123
      %p127 = pneg %p121
      %p128 = scmp.eq.s32.totalorder %s18, 1
      %p129 = por %p127, %p128
      %p130 = scmp.ne.s32.totalorder %s122, %s125
      %p131 = scmp.eq.s32.totalorder %s18, 0
      %p132 = por %p130, %p131
      %p133 = scmp.ne.s32.totalorder %s122, %s125
      %p134 = scmp.eq.s32.totalorder %s23, 1
      %p135 = por %p133, %p134
      %p136 = scmp.ne.s32.totalorder %s125, %s126
      %p137 = scmp.eq.s32.totalorder %s23, 0
      %p138 = por %p136, %p137
      %p139 = scmp.ne.s32.totalorder %s125, %s126
      %p140 = scmp.eq.s32.totalorder %s24, 1
      %p141 = por %p139, %p140
      %p143 = scmp.ne.s32.totalorder %s126, %s142
      %p144 = scmp.eq.s32.totalorder %s24, 0
      %p145 = por %p143, %p144
      %s146 = ssub.s32 %s25, %s37
      %s147 = ssub.s32 %s26, %s33
      %s148 = sor.u32 %s146, %s147
      %p149 = scmp.eq.s32.totalorder %s148, 0
      %s151 = sadd.s32 %s150, 1
      %s152 = scalar_select %p149, %s150, %s151
      %p155 = pneg %p149
      %p156 = scmp.eq.s32.totalorder %s18, 1
      %p157 = por %p155, %p156
      %p158 = scmp.ne.s32.totalorder %s150, %s153
      %p159 = scmp.eq.s32.totalorder %s18, 0
      %p160 = por %p158, %p159
      %p161 = scmp.ne.s32.totalorder %s150, %s153
      %p162 = scmp.eq.s32.totalorder %s23, 1
      %p163 = por %p161, %p162
      %p164 = scmp.ne.s32.totalorder %s153, %s154
      %p165 = scmp.eq.s32.totalorder %s23, 0
      %p166 = por %p164, %p165
      %p167 = scmp.ne.s32.totalorder %s153, %s154
      %p168 = scmp.eq.s32.totalorder %s24, 1
      %p169 = por %p167, %p168
      %p171 = scmp.ne.s32.totalorder %s154, %s170
      %p172 = scmp.eq.s32.totalorder %s24, 0
      %p173 = por %p171, %p172
      %p174 = scmp.le.s32.totalorder 1, %s18
      %p175 = scmp.lt.s32.totalorder %s18, 3
      %p176 = pnand %p174, %p175
      %p177 = pneg %p176
      // Predicated region
      $region9: #{tpu_custom_call.1} parent=5 // pred_check
        _
      $region10: #{tpu_custom_call.1} parent=5 // pred_check_branch
        %179 = sbr.rel (%p176) target = $region12
      $region11: #{tpu_custom_call.1} parent=5 // pred_region
        %s180 = ssub.s32 %s18, 1
        // Predicated region
        $region13: #{tpu_custom_call.1} parent=11 // pred_check
          %p181 = pneg %p56
        $region14: #{tpu_custom_call.1} parent=11 // pred_check_branch
          %183 = sbr.rel (%p181) target = $region16
        $region15: #{tpu_custom_call.1} parent=11 // pred_region
          %s185 = ssub.s32 384, 384
          %186 = vsyncadd [#allocation5], %s185
          %s187 = smul.addr %s27, 6
          %s188 = smul.addr %s187, 64
          %s189 = scalar_lea.hbm %s1, %s188
          %s190 = sshll.u32 [#allocation4], 4
          %s191 = int_to_ptr.vmem [resolvable:$true] %s190
          %196 = dma.hbm_to_vmem [thread:$0]  %s189, 384, %s191, [#allocation5], 64, 64, 4
        $region16: #{tpu_custom_call.1} parent=11 // pred_fallthru
          _
        // Predicated region
        $region17: #{tpu_custom_call.1} parent=11 // pred_check
          %p197 = pneg %p138
        $region18: #{tpu_custom_call.1} parent=11 // pred_check_branch
          %199 = sbr.rel (%p197) target = $region20
        $region19: #{tpu_custom_call.1} parent=11 // pred_region
          %s200 = smul.u32 2, %s28
          %p201 = scmp.lt.s32.totalorder %s200, 1
          %s202 = scalar_select %p201, %s200, 1
          %s203 = smul.addr %s202, 2
          %s204 = scalar_lea.vmem %s4, %s203
          %s205 = smul.u32 2, %s28
        $region20: #{tpu_custom_call.1} parent=11 // pred_fallthru
          _
      $region12: #{tpu_custom_call.1} parent=5 // pred_fallthru
        _
      %p206 = scmp.lt.s32.totalorder %s18, 2
      // Predicated region
      $region21: #{tpu_custom_call.1} parent=5 // pred_check
        %p207 = pneg %p206
      $region22: #{tpu_custom_call.1} parent=5 // pred_check_branch
        %209 = sbr.rel (%p207) target = $region24
      $region23: #{tpu_custom_call.1} parent=5 // pred_region
        // Predicated region
        $region25: #{tpu_custom_call.1} parent=23 // pred_check
          %p210 = pneg %p78
        $region26: #{tpu_custom_call.1} parent=23 // pred_check_branch
          %212 = sbr.rel (%p210) target = $region28
        $region27: #{tpu_custom_call.1} parent=23 // pred_region
          %s213 = smul.u32 2, %s26
          %p214 = scmp.lt.s32.totalorder %s25, 1
          %s215 = scalar_select %p214, %s25, 1
          %p216 = scmp.lt.s32.totalorder %s213, 1
          %s217 = scalar_select %p216, %s213, 1
          %s218 = smul.addr %s215, 2
          %s219 = sadd.s32 %s217, %s218
          %s220 = smul.addr %s219, 4
          %s221 = scalar_lea.vmem %s2, %s220
          %s222 = smul.u32 2, %s26
        $region28: #{tpu_custom_call.1} parent=23 // pred_fallthru
          _
        // Predicated region
        $region29: #{tpu_custom_call.1} parent=23 // pred_check
          %p223 = pneg %p106
        $region30: #{tpu_custom_call.1} parent=23 // pred_check_branch
          %225 = sbr.rel (%p223) target = $region32
        $region31: #{tpu_custom_call.1} parent=23 // pred_region
          %s226 = smul.u32 2, %s26
          %p227 = scmp.lt.s32.totalorder %s25, 1
          %s228 = scalar_select %p227, %s25, 1
          %p229 = scmp.lt.s32.totalorder %s226, 1
          %s230 = scalar_select %p229, %s226, 1
          %s231 = smul.addr %s228, 2
          %s232 = sadd.s32 %s230, %s231
          %s233 = scalar_lea.vmem %s3, %s232
          %s234 = smul.u32 2, %s26
        $region32: #{tpu_custom_call.1} parent=23 // pred_fallthru
          _
      $region24: #{tpu_custom_call.1} parent=5 // pred_fallthru
        _
      %p235 = scmp.le.s32.totalorder 1, %s18
      %p236 = scmp.lt.s32.totalorder %s18, 3
      %p237 = pnand %p235, %p236
      %p238 = pneg %p237
      // Predicated region
      $region33: #{tpu_custom_call.1} parent=5 // pred_check
        _
      $region34: #{tpu_custom_call.1} parent=5 // pred_check_branch
        %240 = sbr.rel (%p237) target = $region36
      $region35: #{tpu_custom_call.1} parent=5 // pred_region
        %s241 = ssub.s32 %s18, 1
        // Predicated region
        $region37: #{tpu_custom_call.1} parent=35 // pred_check
          %p242 = pneg %p56
        $region38: #{tpu_custom_call.1} parent=35 // pred_check_branch
          %244 = sbr.rel (%p242) target = $region40
        $region39: #{tpu_custom_call.1} parent=35 // pred_region
          %245 = dma.done [#allocation5], 384
        $region40: #{tpu_custom_call.1} parent=35 // pred_fallthru
          _
        %p246 = pneg %p56
        %p247 = pneg %p53
        %s248 = smul.u32 2, %s28
        %p249 = scmp.lt.s32.totalorder %s27, 1
        %s250 = scalar_select %p249, %s27, 1
        %p251 = scmp.lt.s32.totalorder %s248, 1
        %s252 = scalar_select %p251, %s248, 1
        %s253 = smul.addr %s250, 2
        %s254 = sadd.s32 %s252, %s253
        %s255 = smul.addr %s254, 4
        %s256 = scalar_lea.vmem %s2, %s255
        %p257 = pneg %p84
        %p258 = pneg %p81
        %s259 = smul.u32 2, %s28
        %p260 = scmp.lt.s32.totalorder %s27, 1
        %s261 = scalar_select %p260, %s27, 1
        %p262 = scmp.lt.s32.totalorder %s259, 1
        %s263 = scalar_select %p262, %s259, 1
        %s264 = smul.addr %s261, 2
        %s265 = sadd.s32 %s263, %s264
        %s266 = scalar_lea.vmem %s3, %s265
        %p267 = pneg %p112
        %p268 = pneg %p109
        %s269 = smul.u32 2, %s28
        %p270 = scmp.lt.s32.totalorder %s269, 1
        %s271 = scalar_select %p270, %s269, 1
        %s272 = smul.addr %s271, 2
        %s273 = scalar_lea.vmem %s4, %s272
        %p274 = pneg %p138
        %p275 = pneg %p135
        %p276 = pneg %p166
        %p277 = pneg %p163
        %s278 = smul.u32 2, %s28
        %p279 = scmp.lt.s32.totalorder %s27, 1
        %s280 = scalar_select %p279, %s27, 1
        %p281 = scmp.lt.s32.totalorder %s278, 1
        %s282 = scalar_select %p281, %s278, 1
        %s283 = smul.addr %s280, 2
        %s284 = sadd.s32 %s282, %s283
        %s285 = smul.addr %s284, 4
        %s286 = scalar_lea.vmem %s5, %s285
        %s287 = smul.u32 2, %s28
        %p288 = scmp.lt.s32.totalorder %s27, 1
        %s289 = scalar_select %p288, %s27, 1
        %p290 = scmp.lt.s32.totalorder %s287, 1
        %s291 = scalar_select %p290, %s287, 1
        %s292 = smul.addr %s289, 2
        %s293 = sadd.s32 %s291, %s292
        %s294 = smul.addr %s293, 4
        %s295 = scalar_lea.vmem %s2, %s294
        %s296 = smul.u32 2, %s28
        %s297 = smul.u32 2, %s28
        %p298 = scmp.lt.s32.totalorder %s27, 1
        %s299 = scalar_select %p298, %s27, 1
        %p300 = scmp.lt.s32.totalorder %s297, 1
        %s301 = scalar_select %p300, %s297, 1
        %s302 = smul.addr %s299, 2
        %s303 = sadd.s32 %s301, %s302
        %s304 = scalar_lea.vmem %s3, %s303
        %s305 = smul.u32 2, %s28
        %s306 = smul.u32 2, %s28
        %p307 = scmp.lt.s32.totalorder %s306, 1
        %s308 = scalar_select %p307, %s306, 1
        %s309 = smul.addr %s308, 2
        %s310 = scalar_lea.vmem %s4, %s309
        %s311 = smul.u32 2, %s28
        %s312 = smul.u32 2, %s28
        %p313 = scmp.lt.s32.totalorder %s27, 1
        %s314 = scalar_select %p313, %s27, 1
        %p315 = scmp.lt.s32.totalorder %s312, 1
        %s316 = scalar_select %p315, %s312, 1
        %s317 = smul.addr %s314, 2
        %s318 = sadd.s32 %s316, %s317
        %s319 = smul.addr %s318, 4
        %s320 = scalar_lea.vmem %s5, %s319
        %s321 = smul.u32 2, %s28
        %v323 = vld [vmem:[%s304] sm:$0x3]
        %s324 = smul.u32 %s27, 128
        %s325 = sadd.s32 %s324, 18
        %s326 = sld [smem:[#allocation3 + %s325]]
        %vm327 = vcmp.gt.f32.partialorder %v323, 0.0
        %v328 = vsel %vm327, 1, 0
        %v329 = vcvt.s32.f32 %v328
        %s330 = smul.f32 %s326, 0.54
        %v331 = vsub.f32 1.0, %v329
        %v332 = vadd.f32 %v323, %v331
        %v333 = vrcp.pop %v332
        %v334 = vmul.f32 %v332, %v333
        %v335 = vsub.f32 2.0, %v334
        %v336 = vmul.f32 %v333, %v335
        %v337 = vstv %s330
        %v338 = vmul.f32 %v337, %v336
        %v339 = vld [vmem:[%s310] ss:$2 sm:$0x3]
        %s340 = scalar_lea.vmem %s310, 1
        %v341 = vld [vmem:[%s340] ss:$2 sm:$0x3]
        %s342 = sld [smem:[#allocation3 + %s324]]
        %s343 = sadd.s32 %s324, 1
        %s344 = sld [smem:[#allocation3 + %s343]]
        %s345 = sadd.s32 %s324, 2
        %s346 = sld [smem:[#allocation3 + %s345]]
        %s347 = sadd.s32 %s324, 3
        %s348 = sld [smem:[#allocation3 + %s347]]
        %s349 = sadd.s32 %s324, 4
        %s350 = sld [smem:[#allocation3 + %s349]]
        %s351 = sadd.s32 %s324, 5
        %s352 = sld [smem:[#allocation3 + %s351]]
        %s353 = sadd.s32 %s324, 6
        %s354 = sld [smem:[#allocation3 + %s353]]
        %s355 = sadd.s32 %s324, 7
        %s356 = sld [smem:[#allocation3 + %s355]]
        %s357 = sadd.s32 %s324, 8
        %s358 = sld [smem:[#allocation3 + %s357]]
        %v359 = vstv %s342
        %v360 = vmul.f32 %v359, %v339
        %v361 = vstv %s344
        %v362 = vmul.f32 %v361, %v341
        %v363 = vadd.f32 %v360, %v362
        %v364 = vstv %s346
        %v365 = vadd.f32 %v363, %v364
        %v366 = vmul.f32 %v365, %v338
        %v367 = vstv %s348
        %v368 = vmul.f32 %v367, %v339
        %v369 = vstv %s350
        %v370 = vmul.f32 %v369, %v341
        %v371 = vadd.f32 %v368, %v370
        %v372 = vstv %s352
        %v373 = vadd.f32 %v371, %v372
        %v374 = vmul.f32 %v373, %v338
        %v375 = vstv %s354
        %v376 = vmul.f32 %v375, %v339
        %v377 = vstv %s356
        %v378 = vmul.f32 %v377, %v341
        %v379 = vadd.f32 %v376, %v378
        %v380 = vstv %s358
        %v381 = vadd.f32 %v379, %v380
        %v382 = vmul.f32 %v381, %v338
        %v383 = vld [vmem:[%s295] ss:$4 sm:$0x3]
        %v384 = vadd.f32 %v366, %v383
        %s385 = scalar_lea.vmem %s295, 1
        %v386 = vld [vmem:[%s385] ss:$4 sm:$0x3]
        %v387 = vadd.f32 %v374, %v386
        %s388 = scalar_lea.vmem %s295, 2
        %v389 = vld [vmem:[%s388] ss:$4 sm:$0x3]
        %v390 = vadd.f32 %v382, %v389
        %s391 = sadd.s32 %s324, 9
        %s392 = sld [smem:[#allocation3 + %s391]]
        %s393 = sadd.s32 %s324, 10
        %s394 = sld [smem:[#allocation3 + %s393]]
        %s395 = sadd.s32 %s324, 11
        %s396 = sld [smem:[#allocation3 + %s395]]
        %s397 = sadd.s32 %s324, 12
        %s398 = sld [smem:[#allocation3 + %s397]]
        %s399 = sadd.s32 %s324, 13
        %s400 = sld [smem:[#allocation3 + %s399]]
        %s401 = sadd.s32 %s324, 14
        %s402 = sld [smem:[#allocation3 + %s401]]
        %s403 = sadd.s32 %s324, 15
        %s404 = sld [smem:[#allocation3 + %s403]]
        %s405 = sadd.s32 %s324, 16
        %s406 = sld [smem:[#allocation3 + %s405]]
        %s407 = sadd.s32 %s324, 17
        %s408 = sld [smem:[#allocation3 + %s407]]
        %v409 = vstv %s392
        %v410 = vmul.f32 %v409, %v384
        %v411 = vstv %s394
        %v412 = vmul.f32 %v411, %v387
        %v413 = vadd.f32 %v410, %v412
        %v414 = vstv %s396
        %v415 = vmul.f32 %v414, %v390
        %v416 = vadd.f32 %v413, %v415
        %v417 = vstv %s398
        %v418 = vmul.f32 %v417, %v384
        %v419 = vstv %s400
        %v420 = vmul.f32 %v419, %v387
        %v421 = vadd.f32 %v418, %v420
        %v422 = vstv %s402
        %v423 = vmul.f32 %v422, %v390
        %v424 = vadd.f32 %v421, %v423
        %v425 = vstv %s404
        %v426 = vmul.f32 %v425, %v384
        %v427 = vstv %s406
        %v428 = vmul.f32 %v427, %v387
        %v429 = vadd.f32 %v426, %v428
        %v430 = vstv %s408
        %v431 = vmul.f32 %v430, %v390
        %v432 = vadd.f32 %v429, %v431
        %v433 = vadd.f32 %v432, 1e-07
        %v434 = vrcp.pop %v433
        %v435 = vmul.f32 %v433, %v434
        %v436 = vsub.f32 2.0, %v435
        %v437 = vmul.f32 %v434, %v436
        %v438 = vmul.f32 %v416, %v437
        %v439 = vmul.f32 %v438, 0.06666667
        %v440 = vsub.f32 %v439, 0.5
        %v441 = vmul.f32 %v440, 2.0
        %v442 = vmul.f32 %v424, %v437
        %v443 = vmul.f32 %v442, 0.06666667
        %v444 = vsub.f32 %v443, 0.5
        %v445 = vmul.f32 %v444, 2.0
        %v446 = vadd.f32 %v441, 1.0
        %v447 = vmul.f32 %v446, 16.0
        %v448 = vsub.f32 %v447, 1.0
        %v449 = vmul.f32 %v448, 0.5
        %v450 = vadd.f32 %v445, 1.0
        %v451 = vmul.f32 %v450, 16.0
        %v452 = vsub.f32 %v451, 1.0
        %v453 = vmul.f32 %v452, 0.5
        %v454 = vmax.f32 %v449, -2.0
        %v455 = vmin.f32 %v454, 17.0
        %v456 = vmax.f32 %v453, -2.0
        %v457 = vmin.f32 %v456, 17.0
        %v458 = vlaneseq
        %v459 = vshrl.u32 %v458, 7
        %v460 = vadd.s32 %v459, 8
        %v461 = vcvt.s32.f32 %v459
        %v462 = vcvt.s32.f32 %v460
        %v464 = vlaneseq
        %v465 = vshrl.u32 %v464, 7
        %v466 = vsub.s32 0, %v465
        %v467 = vrot.slane %v457, %v466
        %v468 = vlaneseq
        %v469 = vshrl.u32 %v468, 7
        %v470 = vsub.s32 1, %v469
        %v471 = vrot.slane %v457, %v470
        %v474 = vsub.f32 %v461, %v467
        %v475 = vsub.f32 %v461, %v471
        %v476 = vsub.f32 %v462, %v467
        %v477 = vsub.f32 %v462, %v471
        %v478 = vand.u32 2147483647, %v474
        %v479 = vand.u32 2147483647, %v475
        %v480 = vand.u32 2147483647, %v476
        %v481 = vand.u32 2147483647, %v477
        %v482 = vsub.f32 1.0, %v478
        %v483 = vsub.f32 1.0, %v479
        %v484 = vsub.f32 1.0, %v480
        %v485 = vsub.f32 1.0, %v481
        %v486 = vmax.f32 %v482, 0.0
        %v487 = vmax.f32 %v483, 0.0
        %v488 = vmax.f32 %v484, 0.0
        %v489 = vmax.f32 %v485, 0.0
        %v491 = vlaneseq
        %v492 = vshrl.u32 %v491, 7
        %v493 = vsub.s32 0, %v492
        %v494 = vrot.slane %v455, %v493
        %v495 = vlaneseq
        %v496 = vshrl.u32 %v495, 7
        %v497 = vsub.s32 1, %v496
        %v498 = vrot.slane %v455, %v497
        %v501 = vsub.f32 %v461, %v494
        %v502 = vsub.f32 %v461, %v498
        %v503 = vsub.f32 %v462, %v494
        %v504 = vsub.f32 %v462, %v498
        %v505 = vand.u32 2147483647, %v501
        %v506 = vand.u32 2147483647, %v502
        %v507 = vand.u32 2147483647, %v503
        %v508 = vand.u32 2147483647, %v504
        %v509 = vsub.f32 1.0, %v505
        %v510 = vsub.f32 1.0, %v506
        %v511 = vsub.f32 1.0, %v507
        %v512 = vsub.f32 1.0, %v508
        %v513 = vmax.f32 %v509, 0.0
        %v514 = vmax.f32 %v510, 0.0
        %v515 = vmax.f32 %v511, 0.0
        %v516 = vmax.f32 %v512, 0.0
        %v517 = vpack.c.bf16 %v515, %v513
        %v518 = vpack.c.bf16 %v516, %v514
        %v519 = vld [vmem:[#allocation4] sm:$0xf]
        %v520 = vld [vmem:[#allocation4 + $0x4] sm:$0xf]
        %v523 = vunpack.c.l.b16 %v519
        %v524 = vunpack.c.l.b16 %v520
        %v525 = vpack.c.b16 %v524, %v523
        %vm526 = vcmask 130048
        %v528 = vsel %vm526, %v525, 0
        %530 = vmatprep.subr.bf16.mxu0 %v518
        %531 = vmatpush1.bf16.msra.mxu0 %v517
        %532 = vmatprep.subr.bf16.mxu0 0
        %533 = vmatpush1.bf16.msra.mxu0 0
        %534 = vmatprep.subr.bf16.mxu0 0
        %535 = vmatpush1.bf16.msra.mxu0 0
        %536 = vmatprep.subr.bf16.mxu0 0
        %537 = vmatpush1.bf16.msra.mxu0 0
        %538 = vmatprep.subr.bf16.mxu0 0
        %539 = vmatpush1.bf16.msra.mxu0 0
        %540 = vmatprep.subr.bf16.mxu0 0
        %541 = vmatpush1.bf16.msra.mxu0 0
        %542 = vmatprep.subr.bf16.mxu0 0
        %543 = vmatpush1.bf16.msra.mxu0 0
        %544 = vmatprep.subr.bf16.mxu0 0
        %545 = vmatpush1.bf16.msra.mxu0 0
        %546 = vmatprep.subr.bf16.mxu0 0
        %547 = vmatpush1.bf16.msra.mxu0 0
        %548 = vmatprep.subr.bf16.mxu0 0
        %549 = vmatpush1.bf16.msra.mxu0 0
        %550 = vmatprep.subr.bf16.mxu0 0
        %551 = vmatpush1.bf16.msra.mxu0 0
        %552 = vmatprep.subr.bf16.mxu0 0
        %553 = vmatpush1.bf16.msra.mxu0 0
        %554 = vmatprep.subr.bf16.mxu0 0
        %555 = vmatpush1.bf16.msra.mxu0 0
        %556 = vmatprep.subr.bf16.mxu0 0
        %557 = vmatpush1.bf16.msra.mxu0 0
        %558 = vmatprep.subr.bf16.mxu0 0
        %559 = vmatpush1.bf16.msra.mxu0 0
        %560 = vmatprep.subr.bf16.mxu0 0
        %561 = vmatpush1.bf16.msra.mxu0 0
        %562 = vmatprep.mubr.bf16.mxu0 0
        %563 = vmatmul.mubr.bf16.gmra.mrb[0].mxu0 %v528
        %v564 = vpop.f32.mrb[0].mxu0
        %v565 = vadd.f32 0.0, %v564
        %v566 = vpop.f32.mrb[0].mxu0
        %v567 = vadd.f32 0.0, %v566
        %v568 = vpop.f32.mrb[0].mxu0
        %v569 = vadd.f32 0.0, %v568
        %v570 = vpop.f32.mrb[0].mxu0
        %v571 = vadd.f32 0.0, %v570
        %572 = vdwg.mxu0
        %v573 = vmul.f32 %v565, %v486
        %v574 = vmul.f32 %v567, %v487
        %v575 = vmul.f32 %v569, %v488
        %v576 = vmul.f32 %v571, %v489
        %v577 = vadd.f32 %v573, %v575
        %v578 = vrot.slane %v577, 4
        %v579 = vadd.f32 %v577, %v578
        %v580 = vrot.slane %v579, 2
        %v581 = vadd.f32 %v579, %v580
        %v582 = vrot.slane %v581, 1
        %v583 = vadd.f32 %v581, %v582
        %v584 = vadd.f32 %v574, %v576
        %v585 = vrot.slane %v584, 4
        %v586 = vadd.f32 %v584, %v585
        %v587 = vrot.slane %v586, 2
        %v588 = vadd.f32 %v586, %v587
        %v589 = vrot.slane %v588, 1
        %v590 = vadd.f32 %v588, %v589
        %v593 = vcombine.low %v583, %v590
        %v595 = vunpack.c.l.s4 1966171168
        %v596 = vunpack.c.0.s8 %v595
        %v597 = vlaneseq
        %v598 = vshrl.u32 %v597, 7
        %v599 = vsub.s32 %v596, %v598
        %v600 = vrot.slane %v593, %v599
        %v602 = vunpack.c.l.s4 1966171168
        %v603 = vunpack.c.0.s8 %v602
        %v604 = vlaneseq
        %v605 = vshrl.u32 %v604, 7
        %v606 = vsub.s32 %v603, %v605
        %v607 = vrot.slane %v600, %v606
        %v609 = vlaneseq
        %vm610 = vcmp.ge.s32.totalorder %v609, 0
        %vm611 = vcmp.lt.s32.totalorder %v609, 256
        %vm612 = vmand %vm610, %vm611
        %613 = vst.msk [vmem:[%s320] ss:$4 sm:$0x3] %vm612, %v607
        %s614 = scalar_lea.vmem [#allocation4], 8
        %v615 = vld [vmem:[%s614] sm:$0xf]
        %v616 = vld [vmem:[%s614 + $0x4] sm:$0xf]
        %v619 = vunpack.c.l.b16 %v615
        %v620 = vunpack.c.l.b16 %v616
        %v621 = vpack.c.b16 %v620, %v619
        %v623 = vsel %vm526, %v621, 0
        %625 = vmatprep.subr.bf16.mxu0 %v518
        %626 = vmatpush1.bf16.msra.mxu0 %v517
        %627 = vmatprep.subr.bf16.mxu0 0
        %628 = vmatpush1.bf16.msra.mxu0 0
        %629 = vmatprep.subr.bf16.mxu0 0
        %630 = vmatpush1.bf16.msra.mxu0 0
        %631 = vmatprep.subr.bf16.mxu0 0
        %632 = vmatpush1.bf16.msra.mxu0 0
        %633 = vmatprep.subr.bf16.mxu0 0
        %634 = vmatpush1.bf16.msra.mxu0 0
        %635 = vmatprep.subr.bf16.mxu0 0
        %636 = vmatpush1.bf16.msra.mxu0 0
        %637 = vmatprep.subr.bf16.mxu0 0
        %638 = vmatpush1.bf16.msra.mxu0 0
        %639 = vmatprep.subr.bf16.mxu0 0
        %640 = vmatpush1.bf16.msra.mxu0 0
        %641 = vmatprep.subr.bf16.mxu0 0
        %642 = vmatpush1.bf16.msra.mxu0 0
        %643 = vmatprep.subr.bf16.mxu0 0
        %644 = vmatpush1.bf16.msra.mxu0 0
        %645 = vmatprep.subr.bf16.mxu0 0
        %646 = vmatpush1.bf16.msra.mxu0 0
        %647 = vmatprep.subr.bf16.mxu0 0
        %648 = vmatpush1.bf16.msra.mxu0 0
        %649 = vmatprep.subr.bf16.mxu0 0
        %650 = vmatpush1.bf16.msra.mxu0 0
        %651 = vmatprep.subr.bf16.mxu0 0
        %652 = vmatpush1.bf16.msra.mxu0 0
        %653 = vmatprep.subr.bf16.mxu0 0
        %654 = vmatpush1.bf16.msra.mxu0 0
        %655 = vmatprep.subr.bf16.mxu0 0
        %656 = vmatpush1.bf16.msra.mxu0 0
        %657 = vmatprep.mubr.bf16.mxu0 0
        %658 = vmatmul.mubr.bf16.gmra.mrb[0].mxu0 %v623
        %v659 = vpop.f32.mrb[0].mxu0
        %v660 = vadd.f32 0.0, %v659
        %v661 = vpop.f32.mrb[0].mxu0
        %v662 = vadd.f32 0.0, %v661
        %v663 = vpop.f32.mrb[0].mxu0
        %v664 = vadd.f32 0.0, %v663
        %v665 = vpop.f32.mrb[0].mxu0
        %v666 = vadd.f32 0.0, %v665
        %667 = vdwg.mxu0
        %v668 = vmul.f32 %v660, %v486
        %v669 = vmul.f32 %v662, %v487
        %v670 = vmul.f32 %v664, %v488
        %v671 = vmul.f32 %v666, %v489
        %v672 = vadd.f32 %v668, %v670
        %v673 = vrot.slane %v672, 4
        %v674 = vadd.f32 %v672, %v673
        %v675 = vrot.slane %v674, 2
        %v676 = vadd.f32 %v674, %v675
        %v677 = vrot.slane %v676, 1
        %v678 = vadd.f32 %v676, %v677
        %v679 = vadd.f32 %v669, %v671
        %v680 = vrot.slane %v679, 4
        %v681 = vadd.f32 %v679, %v680
        %v682 = vrot.slane %v681, 2
        %v683 = vadd.f32 %v681, %v682
        %v684 = vrot.slane %v683, 1
        %v685 = vadd.f32 %v683, %v684
        %v688 = vcombine.low %v678, %v685
        %v690 = vunpack.c.l.s4 1966171168
        %v691 = vunpack.c.0.s8 %v690
        %v692 = vlaneseq
        %v693 = vshrl.u32 %v692, 7
        %v694 = vsub.s32 %v691, %v693
        %v695 = vrot.slane %v688, %v694
        %v697 = vunpack.c.l.s4 1966171168
        %v698 = vunpack.c.0.s8 %v697
        %v699 = vlaneseq
        %v700 = vshrl.u32 %v699, 7
        %v701 = vsub.s32 %v698, %v700
        %v702 = vrot.slane %v695, %v701
        %s704 = scalar_lea.vmem %s320, 1
        %705 = vst.msk [vmem:[%s704] ss:$4 sm:$0x3] %vm612, %v702
        %s706 = scalar_lea.vmem [#allocation4], 16
        %v707 = vld [vmem:[%s706] sm:$0xf]
        %v708 = vld [vmem:[%s706 + $0x4] sm:$0xf]
        %v711 = vunpack.c.l.b16 %v707
        %v712 = vunpack.c.l.b16 %v708
        %v713 = vpack.c.b16 %v712, %v711
        %v715 = vsel %vm526, %v713, 0
        %717 = vmatprep.subr.bf16.mxu0 %v518
        %718 = vmatpush1.bf16.msra.mxu0 %v517
        %719 = vmatprep.subr.bf16.mxu0 0
        %720 = vmatpush1.bf16.msra.mxu0 0
        %721 = vmatprep.subr.bf16.mxu0 0
        %722 = vmatpush1.bf16.msra.mxu0 0
        %723 = vmatprep.subr.bf16.mxu0 0
        %724 = vmatpush1.bf16.msra.mxu0 0
        %725 = vmatprep.subr.bf16.mxu0 0
        %726 = vmatpush1.bf16.msra.mxu0 0
        %727 = vmatprep.subr.bf16.mxu0 0
        %728 = vmatpush1.bf16.msra.mxu0 0
        %729 = vmatprep.subr.bf16.mxu0 0
        %730 = vmatpush1.bf16.msra.mxu0 0
        %731 = vmatprep.subr.bf16.mxu0 0
        %732 = vmatpush1.bf16.msra.mxu0 0
        %733 = vmatprep.subr.bf16.mxu0 0
        %734 = vmatpush1.bf16.msra.mxu0 0
        %735 = vmatprep.subr.bf16.mxu0 0
        %736 = vmatpush1.bf16.msra.mxu0 0
        %737 = vmatprep.subr.bf16.mxu0 0
        %738 = vmatpush1.bf16.msra.mxu0 0
        %739 = vmatprep.subr.bf16.mxu0 0
        %740 = vmatpush1.bf16.msra.mxu0 0
        %741 = vmatprep.subr.bf16.mxu0 0
        %742 = vmatpush1.bf16.msra.mxu0 0
        %743 = vmatprep.subr.bf16.mxu0 0
        %744 = vmatpush1.bf16.msra.mxu0 0
        %745 = vmatprep.subr.bf16.mxu0 0
        %746 = vmatpush1.bf16.msra.mxu0 0
        %747 = vmatprep.subr.bf16.mxu0 0
        %748 = vmatpush1.bf16.msra.mxu0 0
        %749 = vmatprep.mubr.bf16.mxu0 0
        %750 = vmatmul.mubr.bf16.gmra.mrb[0].mxu0 %v715
        %v751 = vpop.f32.mrb[0].mxu0
        %v752 = vadd.f32 0.0, %v751
        %v753 = vpop.f32.mrb[0].mxu0
        %v754 = vadd.f32 0.0, %v753
        %v755 = vpop.f32.mrb[0].mxu0
        %v756 = vadd.f32 0.0, %v755
        %v757 = vpop.f32.mrb[0].mxu0
        %v758 = vadd.f32 0.0, %v757
        %759 = vdwg.mxu0
        %v760 = vmul.f32 %v752, %v486
        %v761 = vmul.f32 %v754, %v487
        %v762 = vmul.f32 %v756, %v488
        %v763 = vmul.f32 %v758, %v489
        %v764 = vadd.f32 %v760, %v762
        %v765 = vrot.slane %v764, 4
        %v766 = vadd.f32 %v764, %v765
        %v767 = vrot.slane %v766, 2
        %v768 = vadd.f32 %v766, %v767
        %v769 = vrot.slane %v768, 1
        %v770 = vadd.f32 %v768, %v769
        %v771 = vadd.f32 %v761, %v763
        %v772 = vrot.slane %v771, 4
        %v773 = vadd.f32 %v771, %v772
        %v774 = vrot.slane %v773, 2
        %v775 = vadd.f32 %v773, %v774
        %v776 = vrot.slane %v775, 1
        %v777 = vadd.f32 %v775, %v776
        %v780 = vcombine.low %v770, %v777
        %v782 = vunpack.c.l.s4 1966171168
        %v783 = vunpack.c.0.s8 %v782
        %v784 = vlaneseq
        %v785 = vshrl.u32 %v784, 7
        %v786 = vsub.s32 %v783, %v785
        %v787 = vrot.slane %v780, %v786
        %v789 = vunpack.c.l.s4 1966171168
        %v790 = vunpack.c.0.s8 %v789
        %v791 = vlaneseq
        %v792 = vshrl.u32 %v791, 7
        %v793 = vsub.s32 %v790, %v792
        %v794 = vrot.slane %v787, %v793
        %s796 = scalar_lea.vmem %s320, 2
        %797 = vst.msk [vmem:[%s796] ss:$4 sm:$0x3] %vm612, %v794
        %s798 = smul.u32 2, %s28
        %p799 = scmp.lt.s32.totalorder %s27, 1
        %s800 = scalar_select %p799, %s27, 1
        %p801 = scmp.lt.s32.totalorder %s798, 1
        %s802 = scalar_select %p801, %s798, 1
        %s803 = smul.addr %s800, 2
        %s804 = sadd.s32 %s802, %s803
        %s805 = smul.addr %s804, 4
        %s806 = scalar_lea.vmem %s5, %s805
        // Predicated region
        $region41: #{tpu_custom_call.1} parent=35 // pred_check
          %p807 = pneg %p163
        $region42: #{tpu_custom_call.1} parent=35 // pred_check_branch
          %809 = sbr.rel (%p807) target = $region44
        $region43: #{tpu_custom_call.1} parent=35 // pred_region
          %s810 = smul.u32 2, %s28
        $region44: #{tpu_custom_call.1} parent=35 // pred_fallthru
          _
      $region36: #{tpu_custom_call.1} parent=5 // pred_fallthru
        _
      %p811 = scmp.le.s32.totalorder 2, %s18
      // Predicated region
      $region45: #{tpu_custom_call.1} parent=5 // pred_check
        %p812 = pneg %p811
      $region46: #{tpu_custom_call.1} parent=5 // pred_check_branch
        %814 = sbr.rel (%p812) target = $region48
      $region47: #{tpu_custom_call.1} parent=5 // pred_region
        %s815 = ssub.s32 %s18, 2
        // Predicated region
        $region49: #{tpu_custom_call.1} parent=47 // pred_check
          %p816 = pneg %p169
        $region50: #{tpu_custom_call.1} parent=47 // pred_check_branch
          %818 = sbr.rel (%p816) target = $region52
        $region51: #{tpu_custom_call.1} parent=47 // pred_region
          %s819 = smul.u32 2, %s30
          %p820 = scmp.lt.s32.totalorder %s29, 1
          %s821 = scalar_select %p820, %s29, 1
          %p822 = scmp.lt.s32.totalorder %s819, 1
          %s823 = scalar_select %p822, %s819, 1
          %s824 = smul.addr %s821, 2
          %s825 = sadd.s32 %s823, %s824
          %s826 = smul.addr %s825, 4
          %s827 = scalar_lea.vmem %s5, %s826
        $region52: #{tpu_custom_call.1} parent=47 // pred_fallthru
          _
      $region48: #{tpu_custom_call.1} parent=5 // pred_fallthru
        _
    $region6: #{tpu_custom_call.1} parent=1 // loop_footer
      %s22 = sadd.s32 1, %s18
    $region7: #{tpu_custom_call.1} parent=1 // loop_footer_branch
      %17 = sbr.rel target = $region3
    $region8: #{tpu_custom_call.1} parent=1 // loop_exit
      _
    %828 = vsyncpa [#allocation5], 1
    %s829 = scalar_lea.sflag [#allocation5], 1
    %830 = vsyncpa %s829, 1

</llo_original>
